<compile_context>
chip_gen: v6e
topology: v6e:2x2x1
jax: 0.10.0
libtpu: 0.0.40
codegen_flags: <defaults>
</compile_context>

<pallas_src>
import math

import jax
import jax.numpy as jnp
from jax.experimental import pallas as pl
from jax.experimental.pallas import tpu as pltpu


def _var_rows_kernel(x_ref, o_ref):
    """Unbiased variance (correction=1) over the last axis of one (tile_m, N) tile."""
    x = x_ref[...].astype(jnp.float32)  # accumulate in f32 even for bf16 inputs
    n = x.shape[-1]
    # Shifted single-pass formulation: with d = x - c for any constant c,
    #   var = (sum(d^2) - sum(d)^2 / n) / (n - 1)
    # Using c = the first element of each row keeps it numerically robust while
    # streaming the tile through the VPU/XLU only once.
    shift = x[:, 0:1]
    d = x - shift
    s = jnp.sum(d, axis=-1, keepdims=True)
    s2 = jnp.sum(d * d, axis=-1, keepdims=True)
    # torch.var returns NaN for n == 1 with correction=1; reproduce that.
    inv_nm1 = (1.0 / (n - 1)) if n > 1 else float("nan")
    var = (s2 - s * s * (1.0 / n)) * inv_nm1
    o_ref[...] = var.astype(o_ref.dtype)


def _select_tile_m(n_cols):
    """Row-tile size targeting ~2 MiB of f32 per input buffer (multiple of 8)."""
    target_bytes = 2 * 1024 * 1024  # conservative across v5e / v6e / v7x VMEM budgets
    tile_m = (target_bytes // max(4 * n_cols, 1)) // 8 * 8
    return max(8, min(tile_m, 2048))


def var_correction(x, keepdim=True, tile_m=None):
    """Equivalent of torch.var(x, -1, keepdim=keepdim) with default correction=1."""
    x = jnp.asarray(x)
    *lead, N = x.shape
    M = math.prod(lead) if lead else 1
    x2d = x.reshape(M, N)

    if tile_m is None:
        tile_m = _select_tile_m(N)
    if tile_m >= M:
        # Single full-extent block (also covers tiny / non-multiple-of-8 M).
        tile_m = M
    grid_m = pl.cdiv(M, tile_m)  # trailing partial block is masked by Pallas

    # TODO(synk): for very wide N that cannot fit a (tile_m, N) tile in VMEM,
    # add a second "arbitrary" grid axis over N with sum/sumsq VMEM accumulators.
    out = pl.pallas_call(
        _var_rows_kernel,
        out_shape=jax.ShapeDtypeStruct((M, 1), x.dtype),
        grid_spec=pl.GridSpec(
            grid=(grid_m,),
            in_specs=[pl.BlockSpec((tile_m, N), lambda i: (i, 0))],
            out_specs=pl.BlockSpec((tile_m, 1), lambda i: (i, 0)),
        ),
        compiler_params=pltpu.CompilerParams(
            dimension_semantics=("parallel",),  # shards rows across v7x's 2 TCs
        ),
        cost_estimate=pl.CostEstimate(
            flops=3 * M * N,
            transcendentals=0,
            bytes_accessed=M * N * x2d.dtype.itemsize + M * x2d.dtype.itemsize,
        ),
    )(x2d)

    if keepdim:
        return out.reshape(tuple(lead) + (1,))
    return out.reshape(tuple(lead))


if __name__ == "__main__":
    key = jax.random.PRNGKey(0)

    def check(x, keepdim, **kw):
        y = var_correction(x, keepdim=keepdim, **kw)
        jax.block_until_ready(y)
        ref = jnp.var(x, axis=-1, ddof=1, keepdims=keepdim)
        assert y.shape == ref.shape, (y.shape, ref.shape)
        assert jnp.allclose(y, ref, rtol=1e-5, atol=1e-6)
        return y

    k0, k1, k2, k3 = jax.random.split(key, 4)

    # 1) Matches the module's get_inputs(): torch.rand(4, 4).
    x_small = jax.random.uniform(k0, (4, 4), dtype=jnp.float32)
    check(x_small, keepdim=True)
    check(x_small, keepdim=False)

    # 2) Multi-block row-tiled path (tile_m forced small to exercise the grid).
    x_tiled = jax.random.uniform(k1, (64, 128), dtype=jnp.float32)
    check(x_tiled, keepdim=True, tile_m=16)

    # 3) Partial trailing block (M not a multiple of tile_m).
    x_ragged = jax.random.uniform(k2, (24, 128), dtype=jnp.float32)
    check(x_ragged, keepdim=False, tile_m=16)

    # 4) Higher-rank input (leading dims flattened into rows).
    x_3d = jax.random.uniform(k3, (2, 4, 32), dtype=jnp.float32)
    check(x_3d, keepdim=True)

    print("KERNEL_OK")
</pallas_src>

<mosaic_0001>
module attributes {stable_mosaic.version = 11 : i64} {
  func.func @_var_rows_kernel(%arg0: i32, %arg1: memref<4x4xf32, #tpu.memory_space<vmem>>, %arg2: memref<4x1xf32, #tpu.memory_space<vmem>>) attributes {dimension_semantics = [#tpu.dimension_semantics<parallel>], iteration_bounds = array<i64: 1>, scalar_prefetch = 0 : i64, scratch_operands = 0 : i64, tpu.core_type = #tpu.core_type<tc>, window_params = [{transform_indices = @transform_0, window_bounds = array<i64: 4, 4>}, {transform_indices = @transform_1, window_bounds = array<i64: 4, 1>}]} {
    %c0 = arith.constant 0 : index
    %c0_0 = arith.constant 0 : index
    %0 = vector.load %arg1[%c0, %c0_0] : memref<4x4xf32, #tpu.memory_space<vmem>>, vector<4x4xf32>
    %1 = vector.extract_strided_slice %0 {offsets = [0, 0], sizes = [4, 1], strides = [1, 1]} : vector<4x4xf32> to vector<4x1xf32>
    %2 = vector.broadcast %1 : vector<4x1xf32> to vector<4x4xf32>
    %3 = arith.subf %0, %2 : vector<4x4xf32>
    %cst = arith.constant dense<0.000000e+00> : vector<4xf32>
    %4 = vector.multi_reduction <add>, %3, %cst [1] : vector<4x4xf32> to vector<4xf32>
    %5 = vector.shape_cast %4 : vector<4xf32> to vector<4x1xf32>
    %6 = arith.mulf %3, %3 : vector<4x4xf32>
    %cst_1 = arith.constant dense<0.000000e+00> : vector<4xf32>
    %7 = vector.multi_reduction <add>, %6, %cst_1 [1] : vector<4x4xf32> to vector<4xf32>
    %8 = vector.shape_cast %7 : vector<4xf32> to vector<4x1xf32>
    %9 = arith.mulf %5, %5 : vector<4x1xf32>
    %cst_2 = arith.constant 2.500000e-01 : f32
    %10 = vector.broadcast %cst_2 : f32 to vector<4x1xf32>
    %11 = arith.mulf %9, %10 : vector<4x1xf32>
    %12 = arith.subf %8, %11 : vector<4x1xf32>
    %cst_3 = arith.constant 0.333333343 : f32
    %13 = vector.broadcast %cst_3 : f32 to vector<4x1xf32>
    %14 = arith.mulf %12, %13 : vector<4x1xf32>
    %c0_4 = arith.constant 0 : index
    %c0_5 = arith.constant 0 : index
    %15 = vector.load %arg2[%c0_4, %c0_5] : memref<4x1xf32, #tpu.memory_space<vmem>>, vector<4x1xf32>
    tpu.vector_store %arg2[%c0_4, %c0_5], %14 {strides = array<i32>} : memref<4x1xf32, #tpu.memory_space<vmem>>, vector<4x1xf32>,
    return
  }
  func.func @transform_0(%arg0: i32) -> (i32, i32) {
    %c0_i32 = arith.constant 0 : i32
    %c0_i32_0 = arith.constant 0 : i32
    return %arg0, %c0_i32 : i32, i32
  }
  func.func @transform_1(%arg0: i32) -> (i32, i32) {
    %c0_i32 = arith.constant 0 : i32
    %c0_i32_0 = arith.constant 0 : i32
    return %arg0, %c0_i32 : i32, i32
  }
}

</mosaic_0001>

<llo_original>
// kernel: tpu_custom_call.1
$region0: #{tpu_custom_call.1}
  #allocation0 [shape = 'u32[]', space=smem, size = 0x4, offset = 0x4, fixed_abs, tag = 'smem constant byte address 0x4 - core index']
  #allocation1 [shape = 'u32[144,128]{1,0:T(1,128)}', space=vmem, size = 0x12000, scoped, tag = 'internal scratch']
  %s0 = inlined_call_operand.hbm [shape: f32[4,4], index: 0, kind: input, shape index: {}]
  %s1 = inlined_call_operand.vmem [shape: f32[4,1], index: 1, kind: output, shape index: {}]
  %s2 = sld [smem:[#allocation0]]
  $region18: #{tpu_custom_call.1} parent=0
    _
  %s4 = ssub.s32 1, %s2
  %s5 = scalar_select 0, %s4, %s2
  $region1: #{tpu_custom_call.1} parent=0
    #allocation2 [shape = 'u8[2048]{0}', space=vmem, size = 0x800, scoped, tag = 'input window, operand 0, single buffered']
    #allocation3 [shape = 's32[1]{0}', space=sflag, size = 0x4, scoped, tag = 'scoped memory for tpu_custom_call.1']
    %6 = vsyncpa [#allocation3], 0
    // Predicated region
    $region2: #{tpu_custom_call.1} parent=1 // pred_check
      _
    $region3: #{tpu_custom_call.1} parent=1 // pred_check_branch
      %8 = sbr.rel (0) target = $region5
    $region4: #{tpu_custom_call.1} parent=1 // pred_region
      %s10 = ssub.s32 64, 64
      %11 = vsyncadd [#allocation3], %s10
      %s13 = sshll.u32 [#allocation2], 4
      %s14 = int_to_ptr.vmem [resolvable:$true] %s13
      %16 = dma.hbm_to_vmem [thread:$0]  %s0, 64, %s14, [#allocation3]
    $region5: #{tpu_custom_call.1} parent=1 // pred_fallthru
      _
    // Predicated region
    $region6: #{tpu_custom_call.1} parent=1 // pred_check
      _
    $region7: #{tpu_custom_call.1} parent=1 // pred_check_branch
      %18 = sbr.rel (0) target = $region9
    $region8: #{tpu_custom_call.1} parent=1 // pred_region
      %19 = dma.done [#allocation3], 64
    $region9: #{tpu_custom_call.1} parent=1 // pred_fallthru
      _
    %v20 = vld [vmem:[#allocation2] sm:$0xf]
    %22 = vset.pattern.permute.xlu0 0
    %23 = vperm.xlu0 %22, %v20
    %v24 = vpop.permute.xlu0 %23
    %v26 = vsub.f32 %v20, %v24
    %vm27 = vcmask 27648
    %v28 = vsel %vm27, %v26, 0.0
    %29 = vadd.xlane.f32.xlu0 %v28
    %v30 = vpop.xlane.xlu0 %29
    %v31 = vmul.f32 %v26, %v26
    %v32 = vsel %vm27, %v31, 0.0
    %33 = vadd.xlane.f32.xlu0 %v32
    %v34 = vpop.xlane.xlu0 %33
    %v35 = vmul.f32 %v30, %v30
    %v36 = vmul.f32 %v35, 0.25
    %v37 = vsub.f32 %v34, %v36
    %v38 = vmul.f32 %v37, 0.33333334
    %vm39 = vcmask 3072
    %40 = vst.msk [vmem:[%s1] sm:$0xf] %vm39, %v38
    // Predicated region
    $region10: #{tpu_custom_call.1} parent=1 // pred_check
      _
    $region11: #{tpu_custom_call.1} parent=1 // pred_check_branch
      %42 = sbr.rel (0) target = $region13
    $region12: #{tpu_custom_call.1} parent=1 // pred_region
      _
    $region13: #{tpu_custom_call.1} parent=1 // pred_fallthru
      _
    // Predicated region
    $region14: #{tpu_custom_call.1} parent=1 // pred_check
      _
    $region15: #{tpu_custom_call.1} parent=1 // pred_check_branch
      %44 = sbr.rel (0) target = $region17
    $region16: #{tpu_custom_call.1} parent=1 // pred_region
      _
    $region17: #{tpu_custom_call.1} parent=1 // pred_fallthru
      _
    %45 = vsyncpa [#allocation3], 1

</llo_original>
